<compile_context>
chip_gen: v5e
topology: v5e:2x2
jax: 0.10.0
libtpu: 0.0.40
codegen_flags: <defaults>
</compile_context>

<pallas_src>
import functools

import numpy as np
import jax
import jax.numpy as jnp
from jax import lax
from jax.experimental import pallas as pl
from jax.experimental.pallas import tpu as pltpu


def _nn_tag_pool_kernel(p_ref, pt_ref, w_ref, b_ref, out_ref, *, n_neigh, n_ped):
    P = p_ref[...]          # (Bblk, N, 4)  columns = [x, y, vx, vy]
    Pt = pt_ref[...]        # (Bblk, 4, N)
    W = w_ref[...]          # (4*n_neigh, emb*n_neigh) block-diagonal, tag folded in bias
    bias = b_ref[...]       # (1, emb*n_neigh)

    bblk = P.shape[0]
    N = n_ped

    # Pairwise squared distance d2[b, i, j] = |obs2[j] - obs2[i]|^2.
    # Monotone in the torch norm over [dx, dy, 1] -> identical nearest ordering.
    x = P[:, :, 0:1]
    y = P[:, :, 1:2]
    xt = Pt[:, 0:1, :]
    yt = Pt[:, 1:2, :]
    dx = xt - x
    dy = yt - y
    d2 = dx * dx + dy * dy                                   # (Bblk, N, N)

    # Pack (d2, col) into one int32 key: bitcast of non-negative f32 is order
    # preserving; the low ceil(log2 N) mantissa bits carry the column index so
    # a single min-reduce gives value + first-argmin (lowest col wins ties).
    mask_bits = max(1, (N - 1).bit_length())
    low_mask = jnp.int32((1 << mask_bits) - 1)
    inv_mask = jnp.int32(-(1 << mask_bits))
    big_key = jnp.int32(0x7F000000)                          # finite, > any real key

    row = lax.broadcasted_iota(jnp.int32, (bblk, N, N), 1)
    col = lax.broadcasted_iota(jnp.int32, (bblk, N, N), 2)

    key = pltpu.bitcast(d2, jnp.int32)
    key = (key & inv_mask) | col
    key = jnp.where(row == col, big_key, key)                # exclude self

    feats = []
    for _ in range(n_neigh):                                 # unrolled (n_neigh = 4)
        kmin = jnp.min(key, axis=-1, keepdims=True)          # (Bblk, N, 1): 1 XLU reduce
        idx = kmin & low_mask                                # argmin column
        sel = col == idx                                     # (Bblk, N, N) one-hot
        # Gather the selected neighbour's [x, y, vx, vy] on the MXU.
        gathered = jnp.einsum('bij,bjk->bik', sel.astype(jnp.float32), P,
                              preferred_element_type=jnp.float32)   # (Bblk, N, 4)
        feats.append(gathered - P)                           # relative pos / vel
        key = jnp.where(sel, big_key, key)                   # drop chosen neighbour

    feat_all = jnp.concatenate(feats, axis=-1)               # (Bblk, N, 4*n_neigh)
    w_b = jnp.broadcast_to(W, (bblk,) + W.shape)             # (Bblk, 4n, emb*n)
    emb = jnp.einsum('bnf,bfo->bno', feat_all, w_b,
                     preferred_element_type=jnp.float32) + bias
    out_ref[...] = jnp.maximum(emb, 0.0)                     # ReLU


def nn_tag_pooling_batched(obs1, obs2, w, b, *, n_neigh=4, scenes_per_block=None):
    """Batched NN_Tag_Pooling forward (no_vel=False).

    obs1, obs2: (B, N, 2); w: (6, emb_dim) == torch weight.T; b: (emb_dim,).
    Returns (B, N, n_neigh * emb_dim).
    """
    B, N, _ = obs2.shape
    # TODO(synk): torch's zero-pad branch for N-1 < n (neighbours kept in original
    # order, rest zeros) is not implemented in the kernel.
    assert N - 1 >= n_neigh, "kernel implements the N-1 >= n branch only"
    # TODO(synk): NaN / occlusion masking of the original pooling is not handled.

    emb_dim = w.shape[1]
    out_dim = n_neigh * emb_dim

    obs1 = obs1.astype(jnp.float32)
    obs2 = obs2.astype(jnp.float32)
    w = w.astype(jnp.float32)
    b = jnp.asarray(b, jnp.float32).reshape(-1)

    # Dense (B, N, 4) plane [x, y, vx, vy] + its lane-dense transpose.
    vel = obs2 - obs1
    P = jnp.concatenate([obs2, vel], axis=-1)                # (B, N, 4)
    Pt = jnp.swapaxes(P, -1, -2)                             # (B, 4, N)

    # Fold the constant visibility-tag columns into the bias; fuse the n_neigh
    # per-neighbour Linear layers into one block-diagonal matmul.
    w4 = w[jnp.array([0, 1, 3, 4]), :]                       # (4, emb_dim)
    b_fold = b + w[2, :] + w[5, :]                           # (emb_dim,)
    w_blk = jnp.zeros((4 * n_neigh, out_dim), jnp.float32)
    for k in range(n_neigh):
        w_blk = w_blk.at[4 * k:4 * (k + 1), emb_dim * k:emb_dim * (k + 1)].set(w4)
    b_all = jnp.tile(b_fold, (n_neigh,)).reshape(1, out_dim)

    if scenes_per_block is None:
        scenes_per_block = min(B, 8)
    while B % scenes_per_block:
        scenes_per_block -= 1
    bblk = scenes_per_block
    grid = (B // bblk,)

    kernel = functools.partial(_nn_tag_pool_kernel, n_neigh=n_neigh, n_ped=N)
    return pl.pallas_call(
        kernel,
        out_shape=jax.ShapeDtypeStruct((B, N, out_dim), jnp.float32),
        grid=grid,
        in_specs=[
            pl.BlockSpec((bblk, N, 4), lambda i: (i, 0, 0)),
            pl.BlockSpec((bblk, 4, N), lambda i: (i, 0, 0)),
            pl.BlockSpec((4 * n_neigh, out_dim), lambda i: (0, 0)),  # stays resident
            pl.BlockSpec((1, out_dim), lambda i: (0, 0)),            # stays resident
        ],
        out_specs=pl.BlockSpec((bblk, N, out_dim), lambda i: (i, 0, 0)),
        compiler_params=pltpu.CompilerParams(
            dimension_semantics=("parallel",)),
    )(P, Pt, w_blk, b_all)


def nn_tag_pooling(obs1, obs2, w, b, *, n_neigh=4):
    """Single-scene forward (matches the torch module's API): obs* are (N, 2)."""
    out = nn_tag_pooling_batched(obs1[None], obs2[None], w, b,
                                 n_neigh=n_neigh, scenes_per_block=1)
    return out[0]


def _reference(obs1, obs2, w, b, n_neigh=4):
    """Pure-numpy mirror of the torch forward (N-1 >= n branch)."""
    obs1 = np.asarray(obs1, np.float32)
    obs2 = np.asarray(obs2, np.float32)
    w = np.asarray(w, np.float32)
    b = np.asarray(b, np.float32)
    N = obs2.shape[0]
    vel = obs2 - obs1
    out = []
    for i in range(N):
        mask = np.ones(N, bool)
        mask[i] = False
        rel_pos = obs2[mask] - obs2[i]
        rel_vel = vel[mask] - vel[i]
        tag = np.ones((N - 1, 1), np.float32)
        rel_pos3 = np.concatenate([rel_pos, tag], axis=1)
        rel_vel3 = np.concatenate([rel_vel, tag], axis=1)
        d = np.linalg.norm(rel_pos3, axis=1)
        idx = np.argsort(d, kind="stable")[:n_neigh]
        feat = np.concatenate([rel_pos3[idx], rel_vel3[idx]], axis=1)  # (n, 6)
        emb = np.maximum(feat @ w + b, 0.0)                            # (n, emb)
        out.append(emb.reshape(-1))
    return np.stack(out)


if __name__ == "__main__":
    B = 8                    # scenes (batched grid)
    N = 6                    # pedestrians per scene (N-1 >= n_neigh)
    n_neigh = 4              # module's self.n
    in_dim = 6               # no_vel=False -> input_dim = 6
    emb_dim = 32 // n_neigh  # out_dim / n = 8

    key = jax.random.PRNGKey(0)
    k1, k2, k3, k4 = jax.random.split(key, 4)
    obs1 = jax.random.normal(k1, (B, N, 2), dtype=jnp.float32)
    obs2 = obs1 + 0.1 * jax.random.normal(k2, (B, N, 2), dtype=jnp.float32)
    # Synthetic params for Linear(6, 8): stored as (in, out) = torch weight.T
    w = 0.1 * jax.random.normal(k3, (in_dim, emb_dim), dtype=jnp.float32)
    b = 0.1 * jax.random.normal(k4, (emb_dim,), dtype=jnp.float32)

    out = nn_tag_pooling_batched(obs1, obs2, w, b, n_neigh=n_neigh,
                                 scenes_per_block=4)   # grid = (2,)
    out = jax.block_until_ready(out)
    assert out.shape == (B, N, n_neigh * emb_dim)

    ref = np.stack([_reference(obs1[s], obs2[s], w, b, n_neigh) for s in range(B)])
    np.testing.assert_allclose(np.asarray(out), ref, rtol=1e-4, atol=1e-5)

    # Single-scene path (module-equivalent API).
    out1 = jax.block_until_ready(nn_tag_pooling(obs1[0], obs2[0], w, b,
                                                n_neigh=n_neigh))
    np.testing.assert_allclose(np.asarray(out1), ref[0], rtol=1e-4, atol=1e-5)

    print("KERNEL_OK")
</pallas_src>

<mosaic_0001>
module attributes {stable_mosaic.version = 11 : i64} {
  func.func @_nn_tag_pool_kernel(%arg0: i32, %arg1: memref<4x6x4xf32, #tpu.memory_space<vmem>>, %arg2: memref<4x4x6xf32, #tpu.memory_space<vmem>>, %arg3: memref<16x32xf32, #tpu.memory_space<vmem>>, %arg4: memref<1x32xf32, #tpu.memory_space<vmem>>, %arg5: memref<4x6x32xf32, #tpu.memory_space<vmem>>) attributes {dimension_semantics = [#tpu.dimension_semantics<parallel>], iteration_bounds = array<i64: 2>, scalar_prefetch = 0 : i64, scratch_operands = 0 : i64, tpu.core_type = #tpu.core_type<tc>, window_params = [{transform_indices = @transform_0, window_bounds = array<i64: 4, 6, 4>}, {transform_indices = @transform_1, window_bounds = array<i64: 4, 4, 6>}, {pipeline_mode = #tpu.pipeline_mode<synchronous>, transform_indices = @transform_2, window_bounds = array<i64: 16, 32>}, {pipeline_mode = #tpu.pipeline_mode<synchronous>, transform_indices = @transform_3, window_bounds = array<i64: 1, 32>}, {transform_indices = @transform_4, window_bounds = array<i64: 4, 6, 32>}]} {
    %c0 = arith.constant 0 : index
    %c0_0 = arith.constant 0 : index
    %c0_1 = arith.constant 0 : index
    %0 = vector.load %arg1[%c0, %c0_0, %c0_1] : memref<4x6x4xf32, #tpu.memory_space<vmem>>, vector<4x6x4xf32>
    %c0_2 = arith.constant 0 : index
    %c0_3 = arith.constant 0 : index
    %c0_4 = arith.constant 0 : index
    %1 = vector.load %arg2[%c0_2, %c0_3, %c0_4] : memref<4x4x6xf32, #tpu.memory_space<vmem>>, vector<4x4x6xf32>
    %c0_5 = arith.constant 0 : index
    %c0_6 = arith.constant 0 : index
    %2 = vector.load %arg3[%c0_5, %c0_6] : memref<16x32xf32, #tpu.memory_space<vmem>>, vector<16x32xf32>
    %c0_7 = arith.constant 0 : index
    %c0_8 = arith.constant 0 : index
    %3 = vector.load %arg4[%c0_7, %c0_8] : memref<1x32xf32, #tpu.memory_space<vmem>>, vector<1x32xf32>
    %4 = vector.extract_strided_slice %0 {offsets = [0, 0, 0], sizes = [4, 6, 1], strides = [1, 1, 1]} : vector<4x6x4xf32> to vector<4x6x1xf32>
    %5 = vector.extract_strided_slice %0 {offsets = [0, 0, 1], sizes = [4, 6, 1], strides = [1, 1, 1]} : vector<4x6x4xf32> to vector<4x6x1xf32>
    %6 = vector.extract_strided_slice %1 {offsets = [0, 0, 0], sizes = [4, 1, 6], strides = [1, 1, 1]} : vector<4x4x6xf32> to vector<4x1x6xf32>
    %7 = vector.extract_strided_slice %1 {offsets = [0, 1, 0], sizes = [4, 1, 6], strides = [1, 1, 1]} : vector<4x4x6xf32> to vector<4x1x6xf32>
    %8 = vector.broadcast %6 : vector<4x1x6xf32> to vector<4x6x6xf32>
    %9 = vector.broadcast %4 : vector<4x6x1xf32> to vector<4x6x6xf32>
    %10 = arith.subf %8, %9 : vector<4x6x6xf32>
    %11 = vector.broadcast %7 : vector<4x1x6xf32> to vector<4x6x6xf32>
    %12 = vector.broadcast %5 : vector<4x6x1xf32> to vector<4x6x6xf32>
    %13 = arith.subf %11, %12 : vector<4x6x6xf32>
    %14 = arith.mulf %10, %10 : vector<4x6x6xf32>
    %15 = arith.mulf %13, %13 : vector<4x6x6xf32>
    %16 = arith.addf %14, %15 : vector<4x6x6xf32>
    %17 = tpu.iota {dimensions = array<i32: 1>} : vector<4x6x6xi32>
    %18 = tpu.iota {dimensions = array<i32: 2>} : vector<4x6x6xi32>
    %19 = tpu.bitcast %16 : vector<4x6x6xf32> -> vector<4x6x6xi32>
    %c-8_i32 = arith.constant -8 : i32
    %20 = vector.broadcast %c-8_i32 : i32 to vector<4x6x6xi32>
    %21 = arith.andi %19, %20 : vector<4x6x6xi32>
    %22 = arith.ori %21, %18 : vector<4x6x6xi32>
    %23 = arith.cmpi eq, %17, %18 : vector<4x6x6xi32>
    %c2130706432_i32 = arith.constant 2130706432 : i32
    %24 = vector.broadcast %c2130706432_i32 : i32 to vector<4x6x6xi32>
    %25 = arith.select %23, %24, %22 : vector<4x6x6xi1>, vector<4x6x6xi32>
    %cst = arith.constant dense<2147483647> : vector<4x6xi32>
    %26 = vector.multi_reduction <minsi>, %25, %cst [2] : vector<4x6x6xi32> to vector<4x6xi32>
    %27 = vector.shape_cast %26 : vector<4x6xi32> to vector<4x6x1xi32>
    %c7_i32 = arith.constant 7 : i32
    %28 = vector.broadcast %c7_i32 : i32 to vector<4x6x1xi32>
    %29 = arith.andi %27, %28 : vector<4x6x1xi32>
    %30 = vector.broadcast %29 : vector<4x6x1xi32> to vector<4x6x6xi32>
    %31 = arith.cmpi eq, %18, %30 : vector<4x6x6xi32>
    %32 = arith.extui %31 : vector<4x6x6xi1> to vector<4x6x6xi32>
    %33 = arith.sitofp %32 : vector<4x6x6xi32> to vector<4x6x6xf32>
    "tpu.trace_start"() <{level = 10 : i32, message = "bij,bjk->bik"}> : () -> ()
    %cst_9 = arith.constant dense<0.000000e+00> : vector<4x6x4xf32>
    %34 = tpu.matmul %33, %0, %cst_9 {dimension_numbers = #tpu.dot_dimension_numbers<[2], [1], [1], [2], [0, 0, 0, 1, 1, 2], [0], [0]>} : vector<4x6x6xf32>, vector<4x6x4xf32>, vector<4x6x4xf32> -> vector<4x6x4xf32>
    "tpu.trace_stop"() : () -> ()
    %35 = arith.subf %34, %0 : vector<4x6x4xf32>
    %c2130706432_i32_10 = arith.constant 2130706432 : i32
    %36 = vector.broadcast %c2130706432_i32_10 : i32 to vector<4x6x6xi32>
    %37 = arith.select %31, %36, %25 : vector<4x6x6xi1>, vector<4x6x6xi32>
    %cst_11 = arith.constant dense<2147483647> : vector<4x6xi32>
    %38 = vector.multi_reduction <minsi>, %37, %cst_11 [2] : vector<4x6x6xi32> to vector<4x6xi32>
    %39 = vector.shape_cast %38 : vector<4x6xi32> to vector<4x6x1xi32>
    %c7_i32_12 = arith.constant 7 : i32
    %40 = vector.broadcast %c7_i32_12 : i32 to vector<4x6x1xi32>
    %41 = arith.andi %39, %40 : vector<4x6x1xi32>
    %42 = vector.broadcast %41 : vector<4x6x1xi32> to vector<4x6x6xi32>
    %43 = arith.cmpi eq, %18, %42 : vector<4x6x6xi32>
    %44 = arith.extui %43 : vector<4x6x6xi1> to vector<4x6x6xi32>
    %45 = arith.sitofp %44 : vector<4x6x6xi32> to vector<4x6x6xf32>
    "tpu.trace_start"() <{level = 10 : i32, message = "bij,bjk->bik"}> : () -> ()
    %cst_13 = arith.constant dense<0.000000e+00> : vector<4x6x4xf32>
    %46 = tpu.matmul %45, %0, %cst_13 {dimension_numbers = #tpu.dot_dimension_numbers<[2], [1], [1], [2], [0, 0, 0, 1, 1, 2], [0], [0]>} : vector<4x6x6xf32>, vector<4x6x4xf32>, vector<4x6x4xf32> -> vector<4x6x4xf32>
    "tpu.trace_stop"() : () -> ()
    %47 = arith.subf %46, %0 : vector<4x6x4xf32>
    %c2130706432_i32_14 = arith.constant 2130706432 : i32
    %48 = vector.broadcast %c2130706432_i32_14 : i32 to vector<4x6x6xi32>
    %49 = arith.select %43, %48, %37 : vector<4x6x6xi1>, vector<4x6x6xi32>
    %cst_15 = arith.constant dense<2147483647> : vector<4x6xi32>
    %50 = vector.multi_reduction <minsi>, %49, %cst_15 [2] : vector<4x6x6xi32> to vector<4x6xi32>
    %51 = vector.shape_cast %50 : vector<4x6xi32> to vector<4x6x1xi32>
    %c7_i32_16 = arith.constant 7 : i32
    %52 = vector.broadcast %c7_i32_16 : i32 to vector<4x6x1xi32>
    %53 = arith.andi %51, %52 : vector<4x6x1xi32>
    %54 = vector.broadcast %53 : vector<4x6x1xi32> to vector<4x6x6xi32>
    %55 = arith.cmpi eq, %18, %54 : vector<4x6x6xi32>
    %56 = arith.extui %55 : vector<4x6x6xi1> to vector<4x6x6xi32>
    %57 = arith.sitofp %56 : vector<4x6x6xi32> to vector<4x6x6xf32>
    "tpu.trace_start"() <{level = 10 : i32, message = "bij,bjk->bik"}> : () -> ()
    %cst_17 = arith.constant dense<0.000000e+00> : vector<4x6x4xf32>
    %58 = tpu.matmul %57, %0, %cst_17 {dimension_numbers = #tpu.dot_dimension_numbers<[2], [1], [1], [2], [0, 0, 0, 1, 1, 2], [0], [0]>} : vector<4x6x6xf32>, vector<4x6x4xf32>, vector<4x6x4xf32> -> vector<4x6x4xf32>
    "tpu.trace_stop"() : () -> ()
    %59 = arith.subf %58, %0 : vector<4x6x4xf32>
    %c2130706432_i32_18 = arith.constant 2130706432 : i32
    %60 = vector.broadcast %c2130706432_i32_18 : i32 to vector<4x6x6xi32>
    %61 = arith.select %55, %60, %49 : vector<4x6x6xi1>, vector<4x6x6xi32>
    %cst_19 = arith.constant dense<2147483647> : vector<4x6xi32>
    %62 = vector.multi_reduction <minsi>, %61, %cst_19 [2] : vector<4x6x6xi32> to vector<4x6xi32>
    %63 = vector.shape_cast %62 : vector<4x6xi32> to vector<4x6x1xi32>
    %c7_i32_20 = arith.constant 7 : i32
    %64 = vector.broadcast %c7_i32_20 : i32 to vector<4x6x1xi32>
    %65 = arith.andi %63, %64 : vector<4x6x1xi32>
    %66 = vector.broadcast %65 : vector<4x6x1xi32> to vector<4x6x6xi32>
    %67 = arith.cmpi eq, %18, %66 : vector<4x6x6xi32>
    %68 = arith.extui %67 : vector<4x6x6xi1> to vector<4x6x6xi32>
    %69 = arith.sitofp %68 : vector<4x6x6xi32> to vector<4x6x6xf32>
    "tpu.trace_start"() <{level = 10 : i32, message = "bij,bjk->bik"}> : () -> ()
    %cst_21 = arith.constant dense<0.000000e+00> : vector<4x6x4xf32>
    %70 = tpu.matmul %69, %0, %cst_21 {dimension_numbers = #tpu.dot_dimension_numbers<[2], [1], [1], [2], [0, 0, 0, 1, 1, 2], [0], [0]>} : vector<4x6x6xf32>, vector<4x6x4xf32>, vector<4x6x4xf32> -> vector<4x6x4xf32>
    "tpu.trace_stop"() : () -> ()
    %71 = arith.subf %70, %0 : vector<4x6x4xf32>
    %72 = tpu.concatenate %35, %47, %59, %71 in 2 : vector<4x6x4xf32>, vector<4x6x4xf32>, vector<4x6x4xf32>, vector<4x6x4xf32> -> vector<4x6x16xf32>
    %73 = vector.shape_cast %2 : vector<16x32xf32> to vector<1x16x32xf32>
    %74 = vector.broadcast %73 : vector<1x16x32xf32> to vector<4x16x32xf32>
    "tpu.trace_start"() <{level = 10 : i32, message = "bnf,bfo->bno"}> : () -> ()
    %cst_22 = arith.constant dense<0.000000e+00> : vector<4x6x32xf32>
    %75 = tpu.matmul %72, %74, %cst_22 {dimension_numbers = #tpu.dot_dimension_numbers<[2], [1], [1], [2], [0, 0, 0, 1, 1, 2], [0], [0]>} : vector<4x6x16xf32>, vector<4x16x32xf32>, vector<4x6x32xf32> -> vector<4x6x32xf32>
    "tpu.trace_stop"() : () -> ()
    %76 = vector.shape_cast %3 : vector<1x32xf32> to vector<1x1x32xf32>
    %77 = vector.broadcast %76 : vector<1x1x32xf32> to vector<4x6x32xf32>
    %78 = arith.addf %75, %77 : vector<4x6x32xf32>
    %cst_23 = arith.constant 0.000000e+00 : f32
    %79 = vector.broadcast %cst_23 : f32 to vector<4x6x32xf32>
    %80 = arith.maximumf %78, %79 : vector<4x6x32xf32>
    %c0_24 = arith.constant 0 : index
    %c0_25 = arith.constant 0 : index
    %c0_26 = arith.constant 0 : index
    %81 = vector.load %arg5[%c0_24, %c0_25, %c0_26] : memref<4x6x32xf32, #tpu.memory_space<vmem>>, vector<4x6x32xf32>
    tpu.vector_store %arg5[%c0_24, %c0_25, %c0_26], %80 {strides = array<i32>} : memref<4x6x32xf32, #tpu.memory_space<vmem>>, vector<4x6x32xf32>,
    return
  }
  func.func @transform_0(%arg0: i32) -> (i32, i32, i32) {
    %c0_i32 = arith.constant 0 : i32
    %c0_i32_0 = arith.constant 0 : i32
    %c0_i32_1 = arith.constant 0 : i32
    return %arg0, %c0_i32, %c0_i32_0 : i32, i32, i32
  }
  func.func @transform_1(%arg0: i32) -> (i32, i32, i32) {
    %c0_i32 = arith.constant 0 : i32
    %c0_i32_0 = arith.constant 0 : i32
    %c0_i32_1 = arith.constant 0 : i32
    return %arg0, %c0_i32, %c0_i32_0 : i32, i32, i32
  }
  func.func @transform_2(%arg0: i32) -> (i32, i32) {
    %c0_i32 = arith.constant 0 : i32
    %c0_i32_0 = arith.constant 0 : i32
    %c0_i32_1 = arith.constant 0 : i32
    return %c0_i32, %c0_i32_0 : i32, i32
  }
  func.func @transform_3(%arg0: i32) -> (i32, i32) {
    %c0_i32 = arith.constant 0 : i32
    %c0_i32_0 = arith.constant 0 : i32
    %c0_i32_1 = arith.constant 0 : i32
    return %c0_i32, %c0_i32_0 : i32, i32
  }
  func.func @transform_4(%arg0: i32) -> (i32, i32, i32) {
    %c0_i32 = arith.constant 0 : i32
    %c0_i32_0 = arith.constant 0 : i32
    %c0_i32_1 = arith.constant 0 : i32
    return %arg0, %c0_i32, %c0_i32_0 : i32, i32, i32
  }
}

</mosaic_0001>

<llo_original>
// kernel: tpu_custom_call.1
$region0: #{tpu_custom_call.1}
  #allocation0 [shape = 'u32[]', space=smem, size = 0x4, offset = 0x4, fixed_abs, tag = 'smem constant byte address 0x4 - core index']
  #allocation1 [shape = 'u32[72,128]{1,0:T(1,128)}', space=vmem, size = 0x9000, scoped, tag = 'internal scratch']
  %s0 = inlined_call_operand.vmem [shape: f32[8,6,4], index: 0, kind: input, shape index: {}]
  %s1 = inlined_call_operand.vmem [shape: f32[8,4,6], index: 1, kind: input, shape index: {}]
  %s2 = inlined_call_operand.vmem [shape: f32[16,32], index: 2, kind: input, shape index: {}]
  %s3 = inlined_call_operand.vmem [shape: f32[1,32], index: 3, kind: input, shape index: {}]
  %s4 = inlined_call_operand.vmem [shape: f32[8,6,32], index: 4, kind: output, shape index: {}]
  %s5 = sld [smem:[#allocation0]]
  $region49: #{tpu_custom_call.1} parent=0
    _
  %s7 = ssub.s32 1, %s5
  %s8 = scalar_select 0, %s7, %s5
  loop: start=0, step=1, limit=4
  $region2: #{tpu_custom_call.1} parent=0 // loop_pre_header
    _
  $region3: #{tpu_custom_call.1} parent=0 // loop_header
    %s10 = sphi 0, %s14
    %p11 = scmp.ge.s32.totalorder %s10, 4
    %s20 = sphi 0, %s22
    %s23 = sphi 0, %s20
    %s24 = sphi 0, %s23
    %s40 = sphi 0, %s24
    %s46 = sphi 0, %s48
    %s49 = sphi 0, %s46
    %s50 = sphi 0, %s49
    %s66 = sphi 0, %s50
    %s70 = sphi 0, %s70
    %s72 = sphi 0, %s70
    %s73 = sphi 0, %s72
    %s87 = sphi 0, %s73
    %s91 = sphi 0, %s91
    %s93 = sphi 0, %s91
    %s94 = sphi 0, %s93
    %s108 = sphi 0, %s94
    %s114 = sphi 0, %s116
    %s117 = sphi 0, %s114
    %s118 = sphi 0, %s117
    %s134 = sphi 0, %s118
  $region4: #{tpu_custom_call.1} parent=0 // loop_header_branch
    %13 = sbr.rel (%p11) target = $region8
  $region5: #{tpu_custom_call.1} parent=0 // loop_body
    %s15 = ssub.s32 %s10, 1
    %s16 = ssub.s32 %s10, 2
    %s17 = sadd.s32 %s10, 1
    %s18 = ssub.s32 %s10, %s17
    %p19 = scmp.eq.s32.totalorder %s18, 0
    %s21 = sadd.s32 %s20, 1
    %s22 = scalar_select %p19, %s20, %s21
    %p25 = pneg %p19
    %p26 = scmp.eq.s32.totalorder %s10, 1
    %p27 = por %p25, %p26
    %p28 = scmp.ne.s32.totalorder %s20, %s23
    %p29 = scmp.eq.s32.totalorder %s10, 0
    %p30 = por %p28, %p29
    %p31 = scmp.ne.s32.totalorder %s20, %s23
    %p32 = scmp.eq.s32.totalorder %s15, 1
    %p33 = por %p31, %p32
    %p34 = scmp.ne.s32.totalorder %s23, %s24
    %p35 = scmp.eq.s32.totalorder %s15, 0
    %p36 = por %p34, %p35
    %p37 = scmp.ne.s32.totalorder %s23, %s24
    %p38 = scmp.eq.s32.totalorder %s16, 1
    %p39 = por %p37, %p38
    %p41 = scmp.ne.s32.totalorder %s24, %s40
    %p42 = scmp.eq.s32.totalorder %s16, 0
    %p43 = por %p41, %p42
    %s44 = ssub.s32 %s10, %s17
    %p45 = scmp.eq.s32.totalorder %s44, 0
    %s47 = sadd.s32 %s46, 1
    %s48 = scalar_select %p45, %s46, %s47
    %p51 = pneg %p45
    %p52 = scmp.eq.s32.totalorder %s10, 1
    %p53 = por %p51, %p52
    %p54 = scmp.ne.s32.totalorder %s46, %s49
    %p55 = scmp.eq.s32.totalorder %s10, 0
    %p56 = por %p54, %p55
    %p57 = scmp.ne.s32.totalorder %s46, %s49
    %p58 = scmp.eq.s32.totalorder %s15, 1
    %p59 = por %p57, %p58
    %p60 = scmp.ne.s32.totalorder %s49, %s50
    %p61 = scmp.eq.s32.totalorder %s15, 0
    %p62 = por %p60, %p61
    %p63 = scmp.ne.s32.totalorder %s49, %s50
    %p64 = scmp.eq.s32.totalorder %s16, 1
    %p65 = por %p63, %p64
    %p67 = scmp.ne.s32.totalorder %s50, %s66
    %p68 = scmp.eq.s32.totalorder %s16, 0
    %p69 = por %p67, %p68
    %s71 = sadd.s32 %s70, 1
    %p74 = scmp.eq.s32.totalorder %s10, 1
    %p75 = scmp.ne.s32.totalorder %s70, %s72
    %p76 = scmp.eq.s32.totalorder %s10, 0
    %p77 = por %p75, %p76
    %p78 = scmp.ne.s32.totalorder %s70, %s72
    %p79 = scmp.eq.s32.totalorder %s15, 1
    %p80 = por %p78, %p79
    %p81 = scmp.ne.s32.totalorder %s72, %s73
    %p82 = scmp.eq.s32.totalorder %s15, 0
    %p83 = por %p81, %p82
    %p84 = scmp.ne.s32.totalorder %s72, %s73
    %p85 = scmp.eq.s32.totalorder %s16, 1
    %p86 = por %p84, %p85
    %p88 = scmp.ne.s32.totalorder %s73, %s87
    %p89 = scmp.eq.s32.totalorder %s16, 0
    %p90 = por %p88, %p89
    %s92 = sadd.s32 %s91, 1
    %p95 = scmp.eq.s32.totalorder %s10, 1
    %p96 = scmp.ne.s32.totalorder %s91, %s93
    %p97 = scmp.eq.s32.totalorder %s10, 0
    %p98 = por %p96, %p97
    %p99 = scmp.ne.s32.totalorder %s91, %s93
    %p100 = scmp.eq.s32.totalorder %s15, 1
    %p101 = por %p99, %p100
    %p102 = scmp.ne.s32.totalorder %s93, %s94
    %p103 = scmp.eq.s32.totalorder %s15, 0
    %p104 = por %p102, %p103
    %p105 = scmp.ne.s32.totalorder %s93, %s94
    %p106 = scmp.eq.s32.totalorder %s16, 1
    %p107 = por %p105, %p106
    %p109 = scmp.ne.s32.totalorder %s94, %s108
    %p110 = scmp.eq.s32.totalorder %s16, 0
    %p111 = por %p109, %p110
    %s112 = ssub.s32 %s10, %s17
    %p113 = scmp.eq.s32.totalorder %s112, 0
    %s115 = sadd.s32 %s114, 1
    %s116 = scalar_select %p113, %s114, %s115
    %p119 = pneg %p113
    %p120 = scmp.eq.s32.totalorder %s10, 1
    %p121 = por %p119, %p120
    %p122 = scmp.ne.s32.totalorder %s114, %s117
    %p123 = scmp.eq.s32.totalorder %s10, 0
    %p124 = por %p122, %p123
    %p125 = scmp.ne.s32.totalorder %s114, %s117
    %p126 = scmp.eq.s32.totalorder %s15, 1
    %p127 = por %p125, %p126
    %p128 = scmp.ne.s32.totalorder %s117, %s118
    %p129 = scmp.eq.s32.totalorder %s15, 0
    %p130 = por %p128, %p129
    %p131 = scmp.ne.s32.totalorder %s117, %s118
    %p132 = scmp.eq.s32.totalorder %s16, 1
    %p133 = por %p131, %p132
    %p135 = scmp.ne.s32.totalorder %s118, %s134
    %p136 = scmp.eq.s32.totalorder %s16, 0
    %p137 = por %p135, %p136
    %p138 = scmp.le.s32.totalorder 1, %s10
    %p139 = scmp.lt.s32.totalorder %s10, 3
    %p140 = pnand %p138, %p139
    %p141 = pneg %p140
    // Predicated region
    $region9: #{tpu_custom_call.1} parent=5 // pred_check
      _
    $region10: #{tpu_custom_call.1} parent=5 // pred_check_branch
      %143 = sbr.rel (%p140) target = $region12
    $region11: #{tpu_custom_call.1} parent=5 // pred_region
      %s144 = ssub.s32 %s10, 1
      // Predicated region
      $region13: #{tpu_custom_call.1} parent=11 // pred_check
        %p145 = pneg %p83
      $region14: #{tpu_custom_call.1} parent=11 // pred_check_branch
        %147 = sbr.rel (%p145) target = $region16
      $region15: #{tpu_custom_call.1} parent=11 // pred_region
        _
      $region16: #{tpu_custom_call.1} parent=11 // pred_fallthru
        _
      // Predicated region
      $region17: #{tpu_custom_call.1} parent=11 // pred_check
        %p148 = pneg %p104
      $region18: #{tpu_custom_call.1} parent=11 // pred_check_branch
        %150 = sbr.rel (%p148) target = $region20
      $region19: #{tpu_custom_call.1} parent=11 // pred_region
        _
      $region20: #{tpu_custom_call.1} parent=11 // pred_fallthru
        _
    $region12: #{tpu_custom_call.1} parent=5 // pred_fallthru
      _
    %p151 = scmp.lt.s32.totalorder %s10, 2
    // Predicated region
    $region21: #{tpu_custom_call.1} parent=5 // pred_check
      %p152 = pneg %p151
    $region22: #{tpu_custom_call.1} parent=5 // pred_check_branch
      %154 = sbr.rel (%p152) target = $region24
    $region23: #{tpu_custom_call.1} parent=5 // pred_region
      // Predicated region
      $region25: #{tpu_custom_call.1} parent=23 // pred_check
        %p155 = pneg %p30
      $region26: #{tpu_custom_call.1} parent=23 // pred_check_branch
        %157 = sbr.rel (%p155) target = $region28
      $region27: #{tpu_custom_call.1} parent=23 // pred_region
        %s158 = smul.u32 4, %s10
        %p159 = scmp.lt.s32.totalorder %s158, 7
        %s160 = scalar_select %p159, %s158, 7
        %s161 = smul.addr %s160, 8
        %s162 = scalar_lea.vmem %s0, %s161
        %s163 = smul.u32 4, %s10
      $region28: #{tpu_custom_call.1} parent=23 // pred_fallthru
        _
      // Predicated region
      $region29: #{tpu_custom_call.1} parent=23 // pred_check
        %p164 = pneg %p56
      $region30: #{tpu_custom_call.1} parent=23 // pred_check_branch
        %166 = sbr.rel (%p164) target = $region32
      $region31: #{tpu_custom_call.1} parent=23 // pred_region
        %s167 = smul.u32 4, %s10
        %p168 = scmp.lt.s32.totalorder %s167, 7
        %s169 = scalar_select %p168, %s167, 7
        %s170 = smul.addr %s169, 4
        %s171 = scalar_lea.vmem %s1, %s170
        %s172 = smul.u32 4, %s10
      $region32: #{tpu_custom_call.1} parent=23 // pred_fallthru
        _
    $region24: #{tpu_custom_call.1} parent=5 // pred_fallthru
      _
    %p173 = scmp.le.s32.totalorder 1, %s10
    %p174 = scmp.lt.s32.totalorder %s10, 3
    %p175 = pnand %p173, %p174
    %p176 = pneg %p175
    // Predicated region
    $region33: #{tpu_custom_call.1} parent=5 // pred_check
      _
    $region34: #{tpu_custom_call.1} parent=5 // pred_check_branch
      %178 = sbr.rel (%p175) target = $region36
    $region35: #{tpu_custom_call.1} parent=5 // pred_region
      %s179 = ssub.s32 %s10, 1
      %s180 = smul.u32 4, %s15
      %p181 = scmp.lt.s32.totalorder %s180, 7
      %s182 = scalar_select %p181, %s180, 7
      %s183 = smul.addr %s182, 8
      %s184 = scalar_lea.vmem %s0, %s183
      %p185 = pneg %p36
      %p186 = pneg %p33
      %s187 = smul.u32 4, %s15
      %p188 = scmp.lt.s32.totalorder %s187, 7
      %s189 = scalar_select %p188, %s187, 7
      %s190 = smul.addr %s189, 4
      %s191 = scalar_lea.vmem %s1, %s190
      %p192 = pneg %p62
      %p193 = pneg %p59
      %p194 = pneg %p83
      %p195 = pneg %p80
      %p196 = pneg %p104
      %p197 = pneg %p101
      %p198 = pneg %p130
      %p199 = pneg %p127
      %s200 = smul.u32 4, %s15
      %p201 = scmp.lt.s32.totalorder %s200, 7
      %s202 = scalar_select %p201, %s200, 7
      %s203 = smul.addr %s202, 8
      %s204 = scalar_lea.vmem %s4, %s203
      %s205 = smul.u32 4, %s15
      %p206 = scmp.lt.s32.totalorder %s205, 7
      %s207 = scalar_select %p206, %s205, 7
      %s208 = smul.addr %s207, 8
      %s209 = scalar_lea.vmem %s0, %s208
      %s210 = smul.u32 4, %s15
      %s211 = smul.u32 4, %s15
      %p212 = scmp.lt.s32.totalorder %s211, 7
      %s213 = scalar_select %p212, %s211, 7
      %s214 = smul.addr %s213, 4
      %s215 = scalar_lea.vmem %s1, %s214
      %s216 = smul.u32 4, %s15
      %s217 = smul.u32 4, %s15
      %p218 = scmp.lt.s32.totalorder %s217, 7
      %s219 = scalar_select %p218, %s217, 7
      %s220 = smul.addr %s219, 8
      %s221 = scalar_lea.vmem %s4, %s220
      %s222 = smul.u32 4, %s15
      %v223 = vld [vmem:[%s209] sm:$0x3f]
      %v224 = vld [vmem:[%s209 + $0x8] sm:$0x3f]
      %v225 = vld [vmem:[%s209 + $0x10] sm:$0x3f]
      %v226 = vld [vmem:[%s209 + $0x18] sm:$0x3f]
      %v227 = vld [vmem:[%s215] sm:$0xf]
      %v228 = vld [vmem:[%s215 + $0x4] sm:$0xf]
      %v229 = vld [vmem:[%s215 + $0x8] sm:$0xf]
      %v230 = vld [vmem:[%s215 + $0xc] sm:$0xf]
      %v231 = vld [vmem:[%s2] sm:$0xff]
      %v232 = vld [vmem:[%s2 + $0x8] sm:$0xff]
      %v233 = vld [vmem:[%s3] sm:$0x1]
      %v234 = vperm.slane %v227, 0
      %v235 = vperm.slane %v228, 0
      %v236 = vperm.slane %v229, 0
      %v237 = vperm.slane %v230, 0
      %239 = vset.pattern.permute.xlu0 0
      %240 = vperm.xlu0 %239, %v223
      %v241 = vpop.permute.xlu0 %240
      %244 = vset.pattern.permute.xlu0 0
      %245 = vperm.xlu0 %244, %v224
      %v246 = vpop.permute.xlu0 %245
      %249 = vset.pattern.permute.xlu0 0
      %250 = vperm.xlu0 %249, %v225
      %v251 = vpop.permute.xlu0 %250
      %254 = vset.pattern.permute.xlu0 0
      %255 = vperm.xlu0 %254, %v226
      %v256 = vpop.permute.xlu0 %255
      %v258 = vsub.f32 %v234, %v241
      %v259 = vsub.f32 %v235, %v246
      %v260 = vsub.f32 %v236, %v251
      %v261 = vsub.f32 %v237, %v256
      %v262 = vperm.slane %v227, 1
      %v263 = vperm.slane %v228, 1
      %v264 = vperm.slane %v229, 1
      %v265 = vperm.slane %v230, 1
      %266 = vset.pattern.permute.xlu0 1
      %267 = vperm.xlu0 %266, %v223
      %v268 = vpop.permute.xlu0 %267
      %270 = vset.pattern.permute.xlu0 1
      %271 = vperm.xlu0 %270, %v224
      %v272 = vpop.permute.xlu0 %271
      %274 = vset.pattern.permute.xlu0 1
      %275 = vperm.xlu0 %274, %v225
      %v276 = vpop.permute.xlu0 %275
      %278 = vset.pattern.permute.xlu0 1
      %279 = vperm.xlu0 %278, %v226
      %v280 = vpop.permute.xlu0 %279
      %v282 = vsub.f32 %v262, %v268
      %v283 = vsub.f32 %v263, %v272
      %v284 = vsub.f32 %v264, %v276
      %v285 = vsub.f32 %v265, %v280
      %v286 = vmul.f32 %v258, %v258
      %v287 = vmul.f32 %v259, %v259
      %v288 = vmul.f32 %v260, %v260
      %v289 = vmul.f32 %v261, %v261
      %v290 = vmul.f32 %v282, %v282
      %v291 = vmul.f32 %v283, %v283
      %v292 = vmul.f32 %v284, %v284
      %v293 = vmul.f32 %v285, %v285
      %v294 = vadd.f32 %v286, %v290
      %v295 = vadd.f32 %v287, %v291
      %v296 = vadd.f32 %v288, %v292
      %v297 = vadd.f32 %v289, %v293
      %v298 = vlaneseq
      %v299 = vshrl.u32 %v298, 7
      %v300 = vlaneseq
      %v301 = vand.u32 %v300, 127
      %v306 = vand.u32 %v294, 4294967288
      %v307 = vand.u32 %v295, 4294967288
      %v308 = vand.u32 %v296, 4294967288
      %v309 = vand.u32 %v297, 4294967288
      %v310 = vor.u32 %v306, %v301
      %v311 = vor.u32 %v307, %v301
      %v312 = vor.u32 %v308, %v301
      %v313 = vor.u32 %v309, %v301
      %vm314 = vcmp.eq.s32.totalorder %v299, %v301
      %v315 = vsel %vm314, 2130706432, %v310
      %v316 = vsel %vm314, 2130706432, %v311
      %v317 = vsel %vm314, 2130706432, %v312
      %v318 = vsel %vm314, 2130706432, %v313
      %vm319 = vcmask 46080
      %v320 = vsel %vm319, %v315, 2147483647
      %v321 = vand.u32 %v320, 65535
      %v322 = vshra.s32 %v320, 16
      %v323 = vcvt.s32.f32 %v321
      %v324 = vcvt.s32.f32 %v322
      %325 = vmin.xlane.f32.xlu0 %v324
      %v326 = vpop.xlane.xlu0 %325
      %vm327 = vcmp.eq.f32.partialorder %v324, %v326
      %v328 = vsel %vm327, %v323, inf
      %329 = vmin.xlane.f32.xlu0 %v328
      %v330 = vpop.xlane.xlu0 %329
      %v331 = vcvt.f32.s32 %v330
      %v332 = vcvt.f32.s32 %v326
      %v333 = vshll.u32 %v332, 16
      %v334 = vadd.s32 %v333, %v331
      %v335 = vsel %vm319, %v316, 2147483647
      %v336 = vand.u32 %v335, 65535
      %v337 = vshra.s32 %v335, 16
      %v338 = vcvt.s32.f32 %v336
      %v339 = vcvt.s32.f32 %v337
      %340 = vmin.xlane.f32.xlu0 %v339
      %v341 = vpop.xlane.xlu0 %340
      %vm342 = vcmp.eq.f32.partialorder %v339, %v341
      %v343 = vsel %vm342, %v338, inf
      %344 = vmin.xlane.f32.xlu0 %v343
      %v345 = vpop.xlane.xlu0 %344
      %v346 = vcvt.f32.s32 %v345
      %v347 = vcvt.f32.s32 %v341
      %v348 = vshll.u32 %v347, 16
      %v349 = vadd.s32 %v348, %v346
      %v350 = vsel %vm319, %v317, 2147483647
      %v351 = vand.u32 %v350, 65535
      %v352 = vshra.s32 %v350, 16
      %v353 = vcvt.s32.f32 %v351
      %v354 = vcvt.s32.f32 %v352
      %355 = vmin.xlane.f32.xlu0 %v354
      %v356 = vpop.xlane.xlu0 %355
      %vm357 = vcmp.eq.f32.partialorder %v354, %v356
      %v358 = vsel %vm357, %v353, inf
      %359 = vmin.xlane.f32.xlu0 %v358
      %v360 = vpop.xlane.xlu0 %359
      %v361 = vcvt.f32.s32 %v360
      %v362 = vcvt.f32.s32 %v356
      %v363 = vshll.u32 %v362, 16
      %v364 = vadd.s32 %v363, %v361
      %v365 = vsel %vm319, %v318, 2147483647
      %v366 = vand.u32 %v365, 65535
      %v367 = vshra.s32 %v365, 16
      %v368 = vcvt.s32.f32 %v366
      %v369 = vcvt.s32.f32 %v367
      %370 = vmin.xlane.f32.xlu0 %v369
      %v371 = vpop.xlane.xlu0 %370
      %vm372 = vcmp.eq.f32.partialorder %v369, %v371
      %v373 = vsel %vm372, %v368, inf
      %374 = vmin.xlane.f32.xlu0 %v373
      %v375 = vpop.xlane.xlu0 %374
      %v376 = vcvt.f32.s32 %v375
      %v377 = vcvt.f32.s32 %v371
      %v378 = vshll.u32 %v377, 16
      %v379 = vadd.s32 %v378, %v376
      %v380 = vand.u32 %v334, 7
      %v381 = vand.u32 %v349, 7
      %v382 = vand.u32 %v364, 7
      %v383 = vand.u32 %v379, 7
      %vm384 = vcmp.eq.s32.totalorder %v301, %v380
      %vm385 = vcmp.eq.s32.totalorder %v301, %v381
      %vm386 = vcmp.eq.s32.totalorder %v301, %v382
      %vm387 = vcmp.eq.s32.totalorder %v301, %v383
      %v388 = vsel %vm384, 1, 0
      %v389 = vsel %vm385, 1, 0
      %v390 = vsel %vm386, 1, 0
      %v391 = vsel %vm387, 1, 0
      %v392 = vcvt.s32.f32 %v388
      %v393 = vcvt.s32.f32 %v389
      %v394 = vcvt.s32.f32 %v390
      %v395 = vcvt.s32.f32 %v391
      %vm396 = vcmask 48128
      %v398 = vsel %vm396, %v392, 0
      %vm400 = vcmask 1045504
      %v401 = vsel %vm400, %v223, 0
      %403 = vmatpush.msra.mxu0 0.0
      %404 = vmatpush.msra.mxu0 0.0
      %405 = vmatpush.msra.mxu0 0.0
      %406 = vmatpush.msra.mxu0 0.0
      %407 = vmatpush.msra.mxu0 0.0
      %408 = vmatpush.msra.mxu0 0.0
      %409 = vmatpush.msra.mxu0 0.0
      %410 = vmatpush.msra.mxu0 0.0
      %411 = vmatpush.msra.mxu0 0.0
      %412 = vmatpush.msra.mxu0 0.0
      %413 = vmatpush.msra.mxu0 0.0
      %414 = vmatpush.msra.mxu0 0.0
      %415 = vmatpush.msra.mxu0 0.0
      %416 = vmatpush.msra.mxu0 0.0
      %417 = vmatpush.msra.mxu0 0.0
      %418 = vmatpush.msra.mxu0 %v401
      %419 = vmatmul.f32.gmra.mxu0 %v398
      %v420 = vpop.f32.mrf.mxu0
      %v421 = vadd.f32 0.0, %v420
      %422 = vdwg.mxu0
      %v424 = vsel %vm396, %v393, 0
      %v426 = vsel %vm400, %v224, 0
      %428 = vmatpush.msra.mxu0 0.0
      %429 = vmatpush.msra.mxu0 0.0
      %430 = vmatpush.msra.mxu0 0.0
      %431 = vmatpush.msra.mxu0 0.0
      %432 = vmatpush.msra.mxu0 0.0
      %433 = vmatpush.msra.mxu0 0.0
      %434 = vmatpush.msra.mxu0 0.0
      %435 = vmatpush.msra.mxu0 0.0
      %436 = vmatpush.msra.mxu0 0.0
      %437 = vmatpush.msra.mxu0 0.0
      %438 = vmatpush.msra.mxu0 0.0
      %439 = vmatpush.msra.mxu0 0.0
      %440 = vmatpush.msra.mxu0 0.0
      %441 = vmatpush.msra.mxu0 0.0
      %442 = vmatpush.msra.mxu0 0.0
      %443 = vmatpush.msra.mxu0 %v426
      %444 = vmatmul.f32.gmra.mxu0 %v424
      %v445 = vpop.f32.mrf.mxu0
      %v446 = vadd.f32 0.0, %v445
      %447 = vdwg.mxu0
      %v449 = vsel %vm396, %v394, 0
      %v451 = vsel %vm400, %v225, 0
      %453 = vmatpush.msra.mxu0 0.0
      %454 = vmatpush.msra.mxu0 0.0
      %455 = vmatpush.msra.mxu0 0.0
      %456 = vmatpush.msra.mxu0 0.0
      %457 = vmatpush.msra.mxu0 0.0
      %458 = vmatpush.msra.mxu0 0.0
      %459 = vmatpush.msra.mxu0 0.0
      %460 = vmatpush.msra.mxu0 0.0
      %461 = vmatpush.msra.mxu0 0.0
      %462 = vmatpush.msra.mxu0 0.0
      %463 = vmatpush.msra.mxu0 0.0
      %464 = vmatpush.msra.mxu0 0.0
      %465 = vmatpush.msra.mxu0 0.0
      %466 = vmatpush.msra.mxu0 0.0
      %467 = vmatpush.msra.mxu0 0.0
      %468 = vmatpush.msra.mxu0 %v451
      %469 = vmatmul.f32.gmra.mxu0 %v449
      %v470 = vpop.f32.mrf.mxu0
      %v471 = vadd.f32 0.0, %v470
      %472 = vdwg.mxu0
      %v474 = vsel %vm396, %v395, 0
      %v476 = vsel %vm400, %v226, 0
      %478 = vmatpush.msra.mxu0 0.0
      %479 = vmatpush.msra.mxu0 0.0
      %480 = vmatpush.msra.mxu0 0.0
      %481 = vmatpush.msra.mxu0 0.0
      %482 = vmatpush.msra.mxu0 0.0
      %483 = vmatpush.msra.mxu0 0.0
      %484 = vmatpush.msra.mxu0 0.0
      %485 = vmatpush.msra.mxu0 0.0
      %486 = vmatpush.msra.mxu0 0.0
      %487 = vmatpush.msra.mxu0 0.0
      %488 = vmatpush.msra.mxu0 0.0
      %489 = vmatpush.msra.mxu0 0.0
      %490 = vmatpush.msra.mxu0 0.0
      %491 = vmatpush.msra.mxu0 0.0
      %492 = vmatpush.msra.mxu0 0.0
      %493 = vmatpush.msra.mxu0 %v476
      %494 = vmatmul.f32.gmra.mxu0 %v474
      %v495 = vpop.f32.mrf.mxu0
      %v496 = vadd.f32 0.0, %v495
      %497 = vdwg.mxu0
      %v498 = vsub.f32 %v421, %v223
      %v499 = vsub.f32 %v446, %v224
      %v500 = vsub.f32 %v471, %v225
      %v501 = vsub.f32 %v496, %v226
      %v502 = vsel %vm384, 2130706432, %v315
      %v503 = vsel %vm385, 2130706432, %v316
      %v504 = vsel %vm386, 2130706432, %v317
      %v505 = vsel %vm387, 2130706432, %v318
      %v506 = vsel %vm319, %v502, 2147483647
      %v507 = vand.u32 %v506, 65535
      %v508 = vshra.s32 %v506, 16
      %v509 = vcvt.s32.f32 %v507
      %v510 = vcvt.s32.f32 %v508
      %511 = vmin.xlane.f32.xlu0 %v510
      %v512 = vpop.xlane.xlu0 %511
      %vm513 = vcmp.eq.f32.partialorder %v510, %v512
      %v514 = vsel %vm513, %v509, inf
      %515 = vmin.xlane.f32.xlu0 %v514
      %v516 = vpop.xlane.xlu0 %515
      %v517 = vcvt.f32.s32 %v516
      %v518 = vcvt.f32.s32 %v512
      %v519 = vshll.u32 %v518, 16
      %v520 = vadd.s32 %v519, %v517
      %v521 = vsel %vm319, %v503, 2147483647
      %v522 = vand.u32 %v521, 65535
      %v523 = vshra.s32 %v521, 16
      %v524 = vcvt.s32.f32 %v522
      %v525 = vcvt.s32.f32 %v523
      %526 = vmin.xlane.f32.xlu0 %v525
      %v527 = vpop.xlane.xlu0 %526
      %vm528 = vcmp.eq.f32.partialorder %v525, %v527
      %v529 = vsel %vm528, %v524, inf
      %530 = vmin.xlane.f32.xlu0 %v529
      %v531 = vpop.xlane.xlu0 %530
      %v532 = vcvt.f32.s32 %v531
      %v533 = vcvt.f32.s32 %v527
      %v534 = vshll.u32 %v533, 16
      %v535 = vadd.s32 %v534, %v532
      %v536 = vsel %vm319, %v504, 2147483647
      %v537 = vand.u32 %v536, 65535
      %v538 = vshra.s32 %v536, 16
      %v539 = vcvt.s32.f32 %v537
      %v540 = vcvt.s32.f32 %v538
      %541 = vmin.xlane.f32.xlu0 %v540
      %v542 = vpop.xlane.xlu0 %541
      %vm543 = vcmp.eq.f32.partialorder %v540, %v542
      %v544 = vsel %vm543, %v539, inf
      %545 = vmin.xlane.f32.xlu0 %v544
      %v546 = vpop.xlane.xlu0 %545
      %v547 = vcvt.f32.s32 %v546
      %v548 = vcvt.f32.s32 %v542
      %v549 = vshll.u32 %v548, 16
      %v550 = vadd.s32 %v549, %v547
      %v551 = vsel %vm319, %v505, 2147483647
      %v552 = vand.u32 %v551, 65535
      %v553 = vshra.s32 %v551, 16
      %v554 = vcvt.s32.f32 %v552
      %v555 = vcvt.s32.f32 %v553
      %556 = vmin.xlane.f32.xlu0 %v555
      %v557 = vpop.xlane.xlu0 %556
      %vm558 = vcmp.eq.f32.partialorder %v555, %v557
      %v559 = vsel %vm558, %v554, inf
      %560 = vmin.xlane.f32.xlu0 %v559
      %v561 = vpop.xlane.xlu0 %560
      %v562 = vcvt.f32.s32 %v561
      %v563 = vcvt.f32.s32 %v557
      %v564 = vshll.u32 %v563, 16
      %v565 = vadd.s32 %v564, %v562
      %v566 = vand.u32 %v520, 7
      %v567 = vand.u32 %v535, 7
      %v568 = vand.u32 %v550, 7
      %v569 = vand.u32 %v565, 7
      %vm570 = vcmp.eq.s32.totalorder %v301, %v566
      %vm571 = vcmp.eq.s32.totalorder %v301, %v567
      %vm572 = vcmp.eq.s32.totalorder %v301, %v568
      %vm573 = vcmp.eq.s32.totalorder %v301, %v569
      %v574 = vsel %vm570, 1, 0
      %v575 = vsel %vm571, 1, 0
      %v576 = vsel %vm572, 1, 0
      %v577 = vsel %vm573, 1, 0
      %v578 = vcvt.s32.f32 %v574
      %v579 = vcvt.s32.f32 %v575
      %v580 = vcvt.s32.f32 %v576
      %v581 = vcvt.s32.f32 %v577
      %v583 = vsel %vm396, %v578, 0
      %585 = vmatpush.msra.mxu0 0.0
      %586 = vmatpush.msra.mxu0 0.0
      %587 = vmatpush.msra.mxu0 0.0
      %588 = vmatpush.msra.mxu0 0.0
      %589 = vmatpush.msra.mxu0 0.0
      %590 = vmatpush.msra.mxu0 0.0
      %591 = vmatpush.msra.mxu0 0.0
      %592 = vmatpush.msra.mxu0 0.0
      %593 = vmatpush.msra.mxu0 0.0
      %594 = vmatpush.msra.mxu0 0.0
      %595 = vmatpush.msra.mxu0 0.0
      %596 = vmatpush.msra.mxu0 0.0
      %597 = vmatpush.msra.mxu0 0.0
      %598 = vmatpush.msra.mxu0 0.0
      %599 = vmatpush.msra.mxu0 0.0
      %600 = vmatpush.msra.mxu0 %v401
      %601 = vmatmul.f32.gmra.mxu0 %v583
      %v602 = vpop.f32.mrf.mxu0
      %v603 = vadd.f32 0.0, %v602
      %604 = vdwg.mxu0
      %v606 = vsel %vm396, %v579, 0
      %608 = vmatpush.msra.mxu0 0.0
      %609 = vmatpush.msra.mxu0 0.0
      %610 = vmatpush.msra.mxu0 0.0
      %611 = vmatpush.msra.mxu0 0.0
      %612 = vmatpush.msra.mxu0 0.0
      %613 = vmatpush.msra.mxu0 0.0
      %614 = vmatpush.msra.mxu0 0.0
      %615 = vmatpush.msra.mxu0 0.0
      %616 = vmatpush.msra.mxu0 0.0
      %617 = vmatpush.msra.mxu0 0.0
      %618 = vmatpush.msra.mxu0 0.0
      %619 = vmatpush.msra.mxu0 0.0
      %620 = vmatpush.msra.mxu0 0.0
      %621 = vmatpush.msra.mxu0 0.0
      %622 = vmatpush.msra.mxu0 0.0
      %623 = vmatpush.msra.mxu0 %v426
      %624 = vmatmul.f32.gmra.mxu0 %v606
      %v625 = vpop.f32.mrf.mxu0
      %v626 = vadd.f32 0.0, %v625
      %627 = vdwg.mxu0
      %v629 = vsel %vm396, %v580, 0
      %631 = vmatpush.msra.mxu0 0.0
      %632 = vmatpush.msra.mxu0 0.0
      %633 = vmatpush.msra.mxu0 0.0
      %634 = vmatpush.msra.mxu0 0.0
      %635 = vmatpush.msra.mxu0 0.0
      %636 = vmatpush.msra.mxu0 0.0
      %637 = vmatpush.msra.mxu0 0.0
      %638 = vmatpush.msra.mxu0 0.0
      %639 = vmatpush.msra.mxu0 0.0
      %640 = vmatpush.msra.mxu0 0.0
      %641 = vmatpush.msra.mxu0 0.0
      %642 = vmatpush.msra.mxu0 0.0
      %643 = vmatpush.msra.mxu0 0.0
      %644 = vmatpush.msra.mxu0 0.0
      %645 = vmatpush.msra.mxu0 0.0
      %646 = vmatpush.msra.mxu0 %v451
      %647 = vmatmul.f32.gmra.mxu0 %v629
      %v648 = vpop.f32.mrf.mxu0
      %v649 = vadd.f32 0.0, %v648
      %650 = vdwg.mxu0
      %v652 = vsel %vm396, %v581, 0
      %654 = vmatpush.msra.mxu0 0.0
      %655 = vmatpush.msra.mxu0 0.0
      %656 = vmatpush.msra.mxu0 0.0
      %657 = vmatpush.msra.mxu0 0.0
      %658 = vmatpush.msra.mxu0 0.0
      %659 = vmatpush.msra.mxu0 0.0
      %660 = vmatpush.msra.mxu0 0.0
      %661 = vmatpush.msra.mxu0 0.0
      %662 = vmatpush.msra.mxu0 0.0
      %663 = vmatpush.msra.mxu0 0.0
      %664 = vmatpush.msra.mxu0 0.0
      %665 = vmatpush.msra.mxu0 0.0
      %666 = vmatpush.msra.mxu0 0.0
      %667 = vmatpush.msra.mxu0 0.0
      %668 = vmatpush.msra.mxu0 0.0
      %669 = vmatpush.msra.mxu0 %v476
      %670 = vmatmul.f32.gmra.mxu0 %v652
      %v671 = vpop.f32.mrf.mxu0
      %v672 = vadd.f32 0.0, %v671
      %673 = vdwg.mxu0
      %v674 = vsub.f32 %v603, %v223
      %v675 = vsub.f32 %v626, %v224
      %v676 = vsub.f32 %v649, %v225
      %v677 = vsub.f32 %v672, %v226
      %v678 = vsel %vm570, 2130706432, %v502
      %v679 = vsel %vm571, 2130706432, %v503
      %v680 = vsel %vm572, 2130706432, %v504
      %v681 = vsel %vm573, 2130706432, %v505
      %v682 = vsel %vm319, %v678, 2147483647
      %v683 = vand.u32 %v682, 65535
      %v684 = vshra.s32 %v682, 16
      %v685 = vcvt.s32.f32 %v683
      %v686 = vcvt.s32.f32 %v684
      %687 = vmin.xlane.f32.xlu0 %v686
      %v688 = vpop.xlane.xlu0 %687
      %vm689 = vcmp.eq.f32.partialorder %v686, %v688
      %v690 = vsel %vm689, %v685, inf
      %691 = vmin.xlane.f32.xlu0 %v690
      %v692 = vpop.xlane.xlu0 %691
      %v693 = vcvt.f32.s32 %v692
      %v694 = vcvt.f32.s32 %v688
      %v695 = vshll.u32 %v694, 16
      %v696 = vadd.s32 %v695, %v693
      %v697 = vsel %vm319, %v679, 2147483647
      %v698 = vand.u32 %v697, 65535
      %v699 = vshra.s32 %v697, 16
      %v700 = vcvt.s32.f32 %v698
      %v701 = vcvt.s32.f32 %v699
      %702 = vmin.xlane.f32.xlu0 %v701
      %v703 = vpop.xlane.xlu0 %702
      %vm704 = vcmp.eq.f32.partialorder %v701, %v703
      %v705 = vsel %vm704, %v700, inf
      %706 = vmin.xlane.f32.xlu0 %v705
      %v707 = vpop.xlane.xlu0 %706
      %v708 = vcvt.f32.s32 %v707
      %v709 = vcvt.f32.s32 %v703
      %v710 = vshll.u32 %v709, 16
      %v711 = vadd.s32 %v710, %v708
      %v712 = vsel %vm319, %v680, 2147483647
      %v713 = vand.u32 %v712, 65535
      %v714 = vshra.s32 %v712, 16
      %v715 = vcvt.s32.f32 %v713
      %v716 = vcvt.s32.f32 %v714
      %717 = vmin.xlane.f32.xlu0 %v716
      %v718 = vpop.xlane.xlu0 %717
      %vm719 = vcmp.eq.f32.partialorder %v716, %v718
      %v720 = vsel %vm719, %v715, inf
      %721 = vmin.xlane.f32.xlu0 %v720
      %v722 = vpop.xlane.xlu0 %721
      %v723 = vcvt.f32.s32 %v722
      %v724 = vcvt.f32.s32 %v718
      %v725 = vshll.u32 %v724, 16
      %v726 = vadd.s32 %v725, %v723
      %v727 = vsel %vm319, %v681, 2147483647
      %v728 = vand.u32 %v727, 65535
      %v729 = vshra.s32 %v727, 16
      %v730 = vcvt.s32.f32 %v728
      %v731 = vcvt.s32.f32 %v729
      %732 = vmin.xlane.f32.xlu0 %v731
      %v733 = vpop.xlane.xlu0 %732
      %vm734 = vcmp.eq.f32.partialorder %v731, %v733
      %v735 = vsel %vm734, %v730, inf
      %736 = vmin.xlane.f32.xlu0 %v735
      %v737 = vpop.xlane.xlu0 %736
      %v738 = vcvt.f32.s32 %v737
      %v739 = vcvt.f32.s32 %v733
      %v740 = vshll.u32 %v739, 16
      %v741 = vadd.s32 %v740, %v738
      %v742 = vand.u32 %v696, 7
      %v743 = vand.u32 %v711, 7
      %v744 = vand.u32 %v726, 7
      %v745 = vand.u32 %v741, 7
      %vm746 = vcmp.eq.s32.totalorder %v301, %v742
      %vm747 = vcmp.eq.s32.totalorder %v301, %v743
      %vm748 = vcmp.eq.s32.totalorder %v301, %v744
      %vm749 = vcmp.eq.s32.totalorder %v301, %v745
      %v750 = vsel %vm746, 1, 0
      %v751 = vsel %vm747, 1, 0
      %v752 = vsel %vm748, 1, 0
      %v753 = vsel %vm749, 1, 0
      %v754 = vcvt.s32.f32 %v750
      %v755 = vcvt.s32.f32 %v751
      %v756 = vcvt.s32.f32 %v752
      %v757 = vcvt.s32.f32 %v753
      %v759 = vsel %vm396, %v754, 0
      %761 = vmatpush.msra.mxu0 0.0
      %762 = vmatpush.msra.mxu0 0.0
      %763 = vmatpush.msra.mxu0 0.0
      %764 = vmatpush.msra.mxu0 0.0
      %765 = vmatpush.msra.mxu0 0.0
      %766 = vmatpush.msra.mxu0 0.0
      %767 = vmatpush.msra.mxu0 0.0
      %768 = vmatpush.msra.mxu0 0.0
      %769 = vmatpush.msra.mxu0 0.0
      %770 = vmatpush.msra.mxu0 0.0
      %771 = vmatpush.msra.mxu0 0.0
      %772 = vmatpush.msra.mxu0 0.0
      %773 = vmatpush.msra.mxu0 0.0
      %774 = vmatpush.msra.mxu0 0.0
      %775 = vmatpush.msra.mxu0 0.0
      %776 = vmatpush.msra.mxu0 %v401
      %777 = vmatmul.f32.gmra.mxu0 %v759
      %v778 = vpop.f32.mrf.mxu0
      %v779 = vadd.f32 0.0, %v778
      %780 = vdwg.mxu0
      %v782 = vsel %vm396, %v755, 0
      %784 = vmatpush.msra.mxu0 0.0
      %785 = vmatpush.msra.mxu0 0.0
      %786 = vmatpush.msra.mxu0 0.0
      %787 = vmatpush.msra.mxu0 0.0
      %788 = vmatpush.msra.mxu0 0.0
      %789 = vmatpush.msra.mxu0 0.0
      %790 = vmatpush.msra.mxu0 0.0
      %791 = vmatpush.msra.mxu0 0.0
      %792 = vmatpush.msra.mxu0 0.0
      %793 = vmatpush.msra.mxu0 0.0
      %794 = vmatpush.msra.mxu0 0.0
      %795 = vmatpush.msra.mxu0 0.0
      %796 = vmatpush.msra.mxu0 0.0
      %797 = vmatpush.msra.mxu0 0.0
      %798 = vmatpush.msra.mxu0 0.0
      %799 = vmatpush.msra.mxu0 %v426
      %800 = vmatmul.f32.gmra.mxu0 %v782
      %v801 = vpop.f32.mrf.mxu0
      %v802 = vadd.f32 0.0, %v801
      %803 = vdwg.mxu0
      %v805 = vsel %vm396, %v756, 0
      %807 = vmatpush.msra.mxu0 0.0
      %808 = vmatpush.msra.mxu0 0.0
      %809 = vmatpush.msra.mxu0 0.0
      %810 = vmatpush.msra.mxu0 0.0
      %811 = vmatpush.msra.mxu0 0.0
      %812 = vmatpush.msra.mxu0 0.0
      %813 = vmatpush.msra.mxu0 0.0
      %814 = vmatpush.msra.mxu0 0.0
      %815 = vmatpush.msra.mxu0 0.0
      %816 = vmatpush.msra.mxu0 0.0
      %817 = vmatpush.msra.mxu0 0.0
      %818 = vmatpush.msra.mxu0 0.0
      %819 = vmatpush.msra.mxu0 0.0
      %820 = vmatpush.msra.mxu0 0.0
      %821 = vmatpush.msra.mxu0 0.0
      %822 = vmatpush.msra.mxu0 %v451
      %823 = vmatmul.f32.gmra.mxu0 %v805
      %v824 = vpop.f32.mrf.mxu0
      %v825 = vadd.f32 0.0, %v824
      %826 = vdwg.mxu0
      %v828 = vsel %vm396, %v757, 0
      %830 = vmatpush.msra.mxu0 0.0
      %831 = vmatpush.msra.mxu0 0.0
      %832 = vmatpush.msra.mxu0 0.0
      %833 = vmatpush.msra.mxu0 0.0
      %834 = vmatpush.msra.mxu0 0.0
      %835 = vmatpush.msra.mxu0 0.0
      %836 = vmatpush.msra.mxu0 0.0
      %837 = vmatpush.msra.mxu0 0.0
      %838 = vmatpush.msra.mxu0 0.0
      %839 = vmatpush.msra.mxu0 0.0
      %840 = vmatpush.msra.mxu0 0.0
      %841 = vmatpush.msra.mxu0 0.0
      %842 = vmatpush.msra.mxu0 0.0
      %843 = vmatpush.msra.mxu0 0.0
      %844 = vmatpush.msra.mxu0 0.0
      %845 = vmatpush.msra.mxu0 %v476
      %846 = vmatmul.f32.gmra.mxu0 %v828
      %v847 = vpop.f32.mrf.mxu0
      %v848 = vadd.f32 0.0, %v847
      %849 = vdwg.mxu0
      %v850 = vsub.f32 %v779, %v223
      %v851 = vsub.f32 %v802, %v224
      %v852 = vsub.f32 %v825, %v225
      %v853 = vsub.f32 %v848, %v226
      %v854 = vsel %vm746, 2130706432, %v678
      %v855 = vsel %vm747, 2130706432, %v679
      %v856 = vsel %vm748, 2130706432, %v680
      %v857 = vsel %vm749, 2130706432, %v681
      %v858 = vsel %vm319, %v854, 2147483647
      %v859 = vand.u32 %v858, 65535
      %v860 = vshra.s32 %v858, 16
      %v861 = vcvt.s32.f32 %v859
      %v862 = vcvt.s32.f32 %v860
      %863 = vmin.xlane.f32.xlu0 %v862
      %v864 = vpop.xlane.xlu0 %863
      %vm865 = vcmp.eq.f32.partialorder %v862, %v864
      %v866 = vsel %vm865, %v861, inf
      %867 = vmin.xlane.f32.xlu0 %v866
      %v868 = vpop.xlane.xlu0 %867
      %v869 = vcvt.f32.s32 %v868
      %v870 = vcvt.f32.s32 %v864
      %v871 = vshll.u32 %v870, 16
      %v872 = vadd.s32 %v871, %v869
      %v873 = vsel %vm319, %v855, 2147483647
      %v874 = vand.u32 %v873, 65535
      %v875 = vshra.s32 %v873, 16
      %v876 = vcvt.s32.f32 %v874
      %v877 = vcvt.s32.f32 %v875
      %878 = vmin.xlane.f32.xlu0 %v877
      %v879 = vpop.xlane.xlu0 %878
      %vm880 = vcmp.eq.f32.partialorder %v877, %v879
      %v881 = vsel %vm880, %v876, inf
      %882 = vmin.xlane.f32.xlu0 %v881
      %v883 = vpop.xlane.xlu0 %882
      %v884 = vcvt.f32.s32 %v883
      %v885 = vcvt.f32.s32 %v879
      %v886 = vshll.u32 %v885, 16
      %v887 = vadd.s32 %v886, %v884
      %v888 = vsel %vm319, %v856, 2147483647
      %v889 = vand.u32 %v888, 65535
      %v890 = vshra.s32 %v888, 16
      %v891 = vcvt.s32.f32 %v889
      %v892 = vcvt.s32.f32 %v890
      %893 = vmin.xlane.f32.xlu0 %v892
      %v894 = vpop.xlane.xlu0 %893
      %vm895 = vcmp.eq.f32.partialorder %v892, %v894
      %v896 = vsel %vm895, %v891, inf
      %897 = vmin.xlane.f32.xlu0 %v896
      %v898 = vpop.xlane.xlu0 %897
      %v899 = vcvt.f32.s32 %v898
      %v900 = vcvt.f32.s32 %v894
      %v901 = vshll.u32 %v900, 16
      %v902 = vadd.s32 %v901, %v899
      %v903 = vsel %vm319, %v857, 2147483647
      %v904 = vand.u32 %v903, 65535
      %v905 = vshra.s32 %v903, 16
      %v906 = vcvt.s32.f32 %v904
      %v907 = vcvt.s32.f32 %v905
      %908 = vmin.xlane.f32.xlu0 %v907
      %v909 = vpop.xlane.xlu0 %908
      %vm910 = vcmp.eq.f32.partialorder %v907, %v909
      %v911 = vsel %vm910, %v906, inf
      %912 = vmin.xlane.f32.xlu0 %v911
      %v913 = vpop.xlane.xlu0 %912
      %v914 = vcvt.f32.s32 %v913
      %v915 = vcvt.f32.s32 %v909
      %v916 = vshll.u32 %v915, 16
      %v917 = vadd.s32 %v916, %v914
      %v918 = vand.u32 %v872, 7
      %v919 = vand.u32 %v887, 7
      %v920 = vand.u32 %v902, 7
      %v921 = vand.u32 %v917, 7
      %vm922 = vcmp.eq.s32.totalorder %v301, %v918
      %vm923 = vcmp.eq.s32.totalorder %v301, %v919
      %vm924 = vcmp.eq.s32.totalorder %v301, %v920
      %vm925 = vcmp.eq.s32.totalorder %v301, %v921
      %v926 = vsel %vm922, 1, 0
      %v927 = vsel %vm923, 1, 0
      %v928 = vsel %vm924, 1, 0
      %v929 = vsel %vm925, 1, 0
      %v930 = vcvt.s32.f32 %v926
      %v931 = vcvt.s32.f32 %v927
      %v932 = vcvt.s32.f32 %v928
      %v933 = vcvt.s32.f32 %v929
      %v935 = vsel %vm396, %v930, 0
      %937 = vmatpush.msra.mxu0 0.0
      %938 = vmatpush.msra.mxu0 0.0
      %939 = vmatpush.msra.mxu0 0.0
      %940 = vmatpush.msra.mxu0 0.0
      %941 = vmatpush.msra.mxu0 0.0
      %942 = vmatpush.msra.mxu0 0.0
      %943 = vmatpush.msra.mxu0 0.0
      %944 = vmatpush.msra.mxu0 0.0
      %945 = vmatpush.msra.mxu0 0.0
      %946 = vmatpush.msra.mxu0 0.0
      %947 = vmatpush.msra.mxu0 0.0
      %948 = vmatpush.msra.mxu0 0.0
      %949 = vmatpush.msra.mxu0 0.0
      %950 = vmatpush.msra.mxu0 0.0
      %951 = vmatpush.msra.mxu0 0.0
      %952 = vmatpush.msra.mxu0 %v401
      %953 = vmatmul.f32.gmra.mxu0 %v935
      %v954 = vpop.f32.mrf.mxu0
      %v955 = vadd.f32 0.0, %v954
      %956 = vdwg.mxu0
      %v958 = vsel %vm396, %v931, 0
      %960 = vmatpush.msra.mxu0 0.0
      %961 = vmatpush.msra.mxu0 0.0
      %962 = vmatpush.msra.mxu0 0.0
      %963 = vmatpush.msra.mxu0 0.0
      %964 = vmatpush.msra.mxu0 0.0
      %965 = vmatpush.msra.mxu0 0.0
      %966 = vmatpush.msra.mxu0 0.0
      %967 = vmatpush.msra.mxu0 0.0
      %968 = vmatpush.msra.mxu0 0.0
      %969 = vmatpush.msra.mxu0 0.0
      %970 = vmatpush.msra.mxu0 0.0
      %971 = vmatpush.msra.mxu0 0.0
      %972 = vmatpush.msra.mxu0 0.0
      %973 = vmatpush.msra.mxu0 0.0
      %974 = vmatpush.msra.mxu0 0.0
      %975 = vmatpush.msra.mxu0 %v426
      %976 = vmatmul.f32.gmra.mxu0 %v958
      %v977 = vpop.f32.mrf.mxu0
      %v978 = vadd.f32 0.0, %v977
      %979 = vdwg.mxu0
      %v981 = vsel %vm396, %v932, 0
      %983 = vmatpush.msra.mxu0 0.0
      %984 = vmatpush.msra.mxu0 0.0
      %985 = vmatpush.msra.mxu0 0.0
      %986 = vmatpush.msra.mxu0 0.0
      %987 = vmatpush.msra.mxu0 0.0
      %988 = vmatpush.msra.mxu0 0.0
      %989 = vmatpush.msra.mxu0 0.0
      %990 = vmatpush.msra.mxu0 0.0
      %991 = vmatpush.msra.mxu0 0.0
      %992 = vmatpush.msra.mxu0 0.0
      %993 = vmatpush.msra.mxu0 0.0
      %994 = vmatpush.msra.mxu0 0.0
      %995 = vmatpush.msra.mxu0 0.0
      %996 = vmatpush.msra.mxu0 0.0
      %997 = vmatpush.msra.mxu0 0.0
      %998 = vmatpush.msra.mxu0 %v451
      %999 = vmatmul.f32.gmra.mxu0 %v981
      %v1000 = vpop.f32.mrf.mxu0
      %v1001 = vadd.f32 0.0, %v1000
      %1002 = vdwg.mxu0
      %v1004 = vsel %vm396, %v933, 0
      %1006 = vmatpush.msra.mxu0 0.0
      %1007 = vmatpush.msra.mxu0 0.0
      %1008 = vmatpush.msra.mxu0 0.0
      %1009 = vmatpush.msra.mxu0 0.0
      %1010 = vmatpush.msra.mxu0 0.0
      %1011 = vmatpush.msra.mxu0 0.0
      %1012 = vmatpush.msra.mxu0 0.0
      %1013 = vmatpush.msra.mxu0 0.0
      %1014 = vmatpush.msra.mxu0 0.0
      %1015 = vmatpush.msra.mxu0 0.0
      %1016 = vmatpush.msra.mxu0 0.0
      %1017 = vmatpush.msra.mxu0 0.0
      %1018 = vmatpush.msra.mxu0 0.0
      %1019 = vmatpush.msra.mxu0 0.0
      %1020 = vmatpush.msra.mxu0 0.0
      %1021 = vmatpush.msra.mxu0 %v476
      %1022 = vmatmul.f32.gmra.mxu0 %v1004
      %v1023 = vpop.f32.mrf.mxu0
      %v1024 = vadd.f32 0.0, %v1023
      %1025 = vdwg.mxu0
      %v1026 = vsub.f32 %v955, %v223
      %v1027 = vsub.f32 %v978, %v224
      %v1028 = vsub.f32 %v1001, %v225
      %v1029 = vsub.f32 %v1024, %v226
      %1034 = vrot.lane.b32.xlu0 %v674, 4
      %v1035 = vpop.permute.xlu0 %1034
      %1036 = vrot.lane.b32.xlu0 %v675, 4
      %v1037 = vpop.permute.xlu0 %1036
      %1038 = vrot.lane.b32.xlu0 %v676, 4
      %v1039 = vpop.permute.xlu0 %1038
      %1040 = vrot.lane.b32.xlu0 %v677, 4
      %v1041 = vpop.permute.xlu0 %1040
      %1050 = vrot.lane.b32.xlu0 %v850, 8
      %v1051 = vpop.permute.xlu0 %1050
      %1052 = vrot.lane.b32.xlu0 %v851, 8
      %v1053 = vpop.permute.xlu0 %1052
      %1054 = vrot.lane.b32.xlu0 %v852, 8
      %v1055 = vpop.permute.xlu0 %1054
      %1056 = vrot.lane.b32.xlu0 %v853, 8
      %v1057 = vpop.permute.xlu0 %1056
      %1066 = vrot.lane.b32.xlu0 %v1026, 12
      %v1067 = vpop.permute.xlu0 %1066
      %1068 = vrot.lane.b32.xlu0 %v1027, 12
      %v1069 = vpop.permute.xlu0 %1068
      %1070 = vrot.lane.b32.xlu0 %v1028, 12
      %v1071 = vpop.permute.xlu0 %1070
      %1072 = vrot.lane.b32.xlu0 %v1029, 12
      %v1073 = vpop.permute.xlu0 %1072
      %vm1078 = vcmask 31744
      %v1079 = vsel %vm1078, %v498, %v1035
      %v1080 = vsel %vm1078, %v499, %v1037
      %v1081 = vsel %vm1078, %v500, %v1039
      %v1082 = vsel %vm1078, %v501, %v1041
      %vm1083 = vcmask 64512
      %v1084 = vsel %vm1083, %v1079, %v1051
      %v1085 = vsel %vm1083, %v1080, %v1053
      %v1086 = vsel %vm1083, %v1081, %v1055
      %v1087 = vsel %vm1083, %v1082, %v1057
      %vm1088 = vcmask 97280
      %v1089 = vsel %vm1088, %v1084, %v1067
      %v1090 = vsel %vm1088, %v1085, %v1069
      %v1091 = vsel %vm1088, %v1086, %v1071
      %v1092 = vsel %vm1088, %v1087, %v1073
      %v1094 = vperm.slane %v233, 0
      %vm1096 = vcmask 130048
      %v1098 = vsel %vm1096, %v1089, 0
      %1100 = vmatpush.msra.mxu0 0.0
      %1101 = vmatpush.msra.mxu0 0.0
      %1102 = vmatpush.msra.mxu0 0.0
      %1103 = vmatpush.msra.mxu0 0.0
      %1104 = vmatpush.msra.mxu0 0.0
      %1105 = vmatpush.msra.mxu0 0.0
      %1106 = vmatpush.msra.mxu0 0.0
      %1107 = vmatpush.msra.mxu0 0.0
      %1108 = vmatpush.msra.mxu0 0.0
      %1109 = vmatpush.msra.mxu0 0.0
      %1110 = vmatpush.msra.mxu0 0.0
      %1111 = vmatpush.msra.mxu0 0.0
      %1112 = vmatpush.msra.mxu0 0.0
      %1113 = vmatpush.msra.mxu0 0.0
      %1114 = vmatpush.msra.mxu0 %v232
      %1115 = vmatpush.msra.mxu0 %v231
      %1116 = vmatmul.f32.gmra.mxu0 %v1098
      %v1117 = vpop.f32.mrf.mxu0
      %v1118 = vadd.f32 %v1094, %v1117
      %1119 = vdwg.mxu0
      %v1121 = vsel %vm1096, %v1090, 0
      %1123 = vmatpush.msra.mxu0 0.0
      %1124 = vmatpush.msra.mxu0 0.0
      %1125 = vmatpush.msra.mxu0 0.0
      %1126 = vmatpush.msra.mxu0 0.0
      %1127 = vmatpush.msra.mxu0 0.0
      %1128 = vmatpush.msra.mxu0 0.0
      %1129 = vmatpush.msra.mxu0 0.0
      %1130 = vmatpush.msra.mxu0 0.0
      %1131 = vmatpush.msra.mxu0 0.0
      %1132 = vmatpush.msra.mxu0 0.0
      %1133 = vmatpush.msra.mxu0 0.0
      %1134 = vmatpush.msra.mxu0 0.0
      %1135 = vmatpush.msra.mxu0 0.0
      %1136 = vmatpush.msra.mxu0 0.0
      %1137 = vmatpush.msra.mxu0 %v232
      %1138 = vmatpush.msra.mxu0 %v231
      %1139 = vmatmul.f32.gmra.mxu0 %v1121
      %v1140 = vpop.f32.mrf.mxu0
      %v1141 = vadd.f32 %v1094, %v1140
      %1142 = vdwg.mxu0
      %v1144 = vsel %vm1096, %v1091, 0
      %1146 = vmatpush.msra.mxu0 0.0
      %1147 = vmatpush.msra.mxu0 0.0
      %1148 = vmatpush.msra.mxu0 0.0
      %1149 = vmatpush.msra.mxu0 0.0
      %1150 = vmatpush.msra.mxu0 0.0
      %1151 = vmatpush.msra.mxu0 0.0
      %1152 = vmatpush.msra.mxu0 0.0
      %1153 = vmatpush.msra.mxu0 0.0
      %1154 = vmatpush.msra.mxu0 0.0
      %1155 = vmatpush.msra.mxu0 0.0
      %1156 = vmatpush.msra.mxu0 0.0
      %1157 = vmatpush.msra.mxu0 0.0
      %1158 = vmatpush.msra.mxu0 0.0
      %1159 = vmatpush.msra.mxu0 0.0
      %1160 = vmatpush.msra.mxu0 %v232
      %1161 = vmatpush.msra.mxu0 %v231
      %1162 = vmatmul.f32.gmra.mxu0 %v1144
      %v1163 = vpop.f32.mrf.mxu0
      %v1164 = vadd.f32 %v1094, %v1163
      %1165 = vdwg.mxu0
      %v1167 = vsel %vm1096, %v1092, 0
      %1169 = vmatpush.msra.mxu0 0.0
      %1170 = vmatpush.msra.mxu0 0.0
      %1171 = vmatpush.msra.mxu0 0.0
      %1172 = vmatpush.msra.mxu0 0.0
      %1173 = vmatpush.msra.mxu0 0.0
      %1174 = vmatpush.msra.mxu0 0.0
      %1175 = vmatpush.msra.mxu0 0.0
      %1176 = vmatpush.msra.mxu0 0.0
      %1177 = vmatpush.msra.mxu0 0.0
      %1178 = vmatpush.msra.mxu0 0.0
      %1179 = vmatpush.msra.mxu0 0.0
      %1180 = vmatpush.msra.mxu0 0.0
      %1181 = vmatpush.msra.mxu0 0.0
      %1182 = vmatpush.msra.mxu0 0.0
      %1183 = vmatpush.msra.mxu0 %v232
      %1184 = vmatpush.msra.mxu0 %v231
      %1185 = vmatmul.f32.gmra.mxu0 %v1167
      %v1186 = vpop.f32.mrf.mxu0
      %v1187 = vadd.f32 %v1094, %v1186
      %1188 = vdwg.mxu0
      %v1189 = vmax.f32 %v1118, 0.0
      %v1190 = vmax.f32 %v1141, 0.0
      %v1191 = vmax.f32 %v1164, 0.0
      %v1192 = vmax.f32 %v1187, 0.0
      %vm1193 = vcmask 259072
      %1194 = vst.msk [vmem:[%s221] sm:$0x3f] %vm1193, %v1189
      %1195 = vst.msk [vmem:[%s221 + $0x8] sm:$0x3f] %vm1193, %v1190
      %1196 = vst.msk [vmem:[%s221 + $0x10] sm:$0x3f] %vm1193, %v1191
      %1197 = vst.msk [vmem:[%s221 + $0x18] sm:$0x3f] %vm1193, %v1192
      %s1198 = smul.u32 4, %s15
      %p1199 = scmp.lt.s32.totalorder %s1198, 7
      %s1200 = scalar_select %p1199, %s1198, 7
      %s1201 = smul.addr %s1200, 8
      %s1202 = scalar_lea.vmem %s4, %s1201
      // Predicated region
      $region37: #{tpu_custom_call.1} parent=35 // pred_check
        %p1203 = pneg %p127
      $region38: #{tpu_custom_call.1} parent=35 // pred_check_branch
        %1205 = sbr.rel (%p1203) target = $region40
      $region39: #{tpu_custom_call.1} parent=35 // pred_region
        %s1206 = smul.u32 4, %s15
      $region40: #{tpu_custom_call.1} parent=35 // pred_fallthru
        _
    $region36: #{tpu_custom_call.1} parent=5 // pred_fallthru
      _
    %p1207 = scmp.le.s32.totalorder 2, %s10
    // Predicated region
    $region41: #{tpu_custom_call.1} parent=5 // pred_check
      %p1208 = pneg %p1207
    $region42: #{tpu_custom_call.1} parent=5 // pred_check_branch
      %1210 = sbr.rel (%p1208) target = $region44
    $region43: #{tpu_custom_call.1} parent=5 // pred_region
      %s1211 = ssub.s32 %s10, 2
      // Predicated region
      $region45: #{tpu_custom_call.1} parent=43 // pred_check
        %p1212 = pneg %p133
      $region46: #{tpu_custom_call.1} parent=43 // pred_check_branch
        %1214 = sbr.rel (%p1212) target = $region48
      $region47: #{tpu_custom_call.1} parent=43 // pred_region
        %s1215 = smul.u32 4, %s16
        %p1216 = scmp.lt.s32.totalorder %s1215, 7
        %s1217 = scalar_select %p1216, %s1215, 7
        %s1218 = smul.addr %s1217, 8
        %s1219 = scalar_lea.vmem %s4, %s1218
      $region48: #{tpu_custom_call.1} parent=43 // pred_fallthru
        _
    $region44: #{tpu_custom_call.1} parent=5 // pred_fallthru
      _
  $region6: #{tpu_custom_call.1} parent=0 // loop_footer
    %s14 = sadd.s32 1, %s10
  $region7: #{tpu_custom_call.1} parent=0 // loop_footer_branch
    %9 = sbr.rel target = $region3
  $region8: #{tpu_custom_call.1} parent=0 // loop_exit
    _

</llo_original>
